<compile_context>
chip_gen: v6e
topology: v6e:2x2x1
jax: 0.10.0
libtpu: 0.0.40
codegen_flags: <defaults>
</compile_context>

<pallas_src>
import functools

import jax
import jax.numpy as jnp
from jax.experimental import pallas as pl
from jax.experimental.pallas import tpu as pltpu

_IN_FEATS = 9   # number of scalar input features
_IN_PAD = 16    # input operand width (multiple of 8, full-extent last dim)


def _round_up(x, m):
    return ((x + m - 1) // m) * m


# --------------------------------------------------------------------------
# Kernel: one batch tile runs the whole 8-layer MLP on padded (P-wide) tiles.
# --------------------------------------------------------------------------
def _hd_pred_kernel(x_ref, w_ref, b_ref, out_ref, *, n_layers):
    w_dtype = w_ref.dtype
    x = x_ref[...]                                       # (TB, 16), f32
    # Layer 1: K=16 dot against the first 16 rows of the packed layer-0 tile.
    # Rows 9..15 of the slab and columns 9..15 of x are zero -> exact.
    lhs = x if w_dtype == jnp.float32 else x.astype(w_dtype)
    y = jnp.dot(lhs, w_ref[0, :_IN_PAD, :], preferred_element_type=jnp.float32)
    h = jnp.maximum(y + b_ref[0], 0.0)                   # (TB, P)
    for i in range(1, n_layers):                         # statically unrolled (7)
        lhs = h if w_dtype == jnp.float32 else h.astype(w_dtype)
        y = jnp.dot(lhs, w_ref[i], preferred_element_type=jnp.float32)
        h = jnp.maximum(y + b_ref[i], 0.0)
    # Only lane 0 of the final padded activation is real -> narrow store.
    out_ref[...] = h[:, :1]                              # (TB, 1)


# --------------------------------------------------------------------------
# Wrapper
# --------------------------------------------------------------------------
def hd_pred_pallas(f1, f2, f3, f4, f5, f6, f7, f8, f9, w_slab, b_slab,
                   *, batch_tile=None, interpret=False):
    """f1..f9: (B,) feature vectors.  w_slab: (L,P,P), b_slab: (L,1,P)."""
    n_layers, P, _ = w_slab.shape

    feats = jnp.stack([f1, f2, f3, f4, f5, f6, f7, f8, f9], axis=1)
    feats = feats.astype(jnp.float32)                    # (B, 9)
    B = feats.shape[0]

    if batch_tile is None:
        # Small batches: one tile.  Large batches: 512-row tiles (sweep
        # 512-2048 for peak HBM roofline; prefer an even grid count on v7x).
        batch_tile = min(512, _round_up(B, 8))
    TB = _round_up(max(int(batch_tile), 8), 8)           # keep (8,128) rule valid
    B_pad = _round_up(B, TB)

    # Narrow input operand (B_pad, 16): ~8x less input HBM traffic than a
    # P=128-wide pad; padded rows/cols are zero and get sliced off below.
    x_in = jnp.pad(feats, ((0, B_pad - B), (0, _IN_PAD - feats.shape[1])))

    kernel = functools.partial(_hd_pred_kernel, n_layers=n_layers)

    out = pl.pallas_call(
        kernel,
        out_shape=jax.ShapeDtypeStruct((B_pad, 1), jnp.float32),
        grid=(B_pad // TB,),
        in_specs=[
            # Batch-tiled, narrow input.
            pl.BlockSpec((TB, _IN_PAD), lambda i: (i, 0)),
            # Packed weight slab: constant block index + single buffering ->
            # DMA'd once, VMEM-resident across all batch tiles, no 2x footprint.
            pl.BlockSpec((n_layers, P, P), lambda i: (0, 0, 0),
                         pipeline_mode=pl.Buffered(1)),
            # Packed bias slab (f32).
            pl.BlockSpec((n_layers, 1, P), lambda i: (0, 0, 0),
                         pipeline_mode=pl.Buffered(1)),
        ],
        out_specs=pl.BlockSpec((TB, 1), lambda i: (i, 0)),
        compiler_params=pltpu.CompilerParams(
            dimension_semantics=("parallel",),            # shards batch on v7x
            allow_input_fusion=[True, False, False],      # fuse stack/pad into x
        ),
        interpret=interpret,
    )(x_in, w_slab, b_slab)

    return out[:B]                                        # (B, 1)


# --------------------------------------------------------------------------
# Parameter construction / packing (done once, outside the hot path)
# --------------------------------------------------------------------------
def init_params(hidden_size, key):
    """Deterministic init matching the nn.Linear shapes of hd_pred.
    Weights stored as (in, out) == transpose of PyTorch's (out, in)."""
    dims = [
        (_IN_FEATS, hidden_size),
        (hidden_size, hidden_size),
        (hidden_size, hidden_size * 3),
        (hidden_size * 3, hidden_size * 4),
        (hidden_size * 4, hidden_size),
        (hidden_size, hidden_size),
        (hidden_size, hidden_size),
        (hidden_size, 1),
    ]
    params = []
    for fan_in, fan_out in dims:
        key, kw, kb = jax.random.split(key, 3)
        bound = 1.0 / jnp.sqrt(jnp.float32(fan_in))
        w = jax.random.uniform(kw, (fan_in, fan_out), jnp.float32, -bound, bound)
        b = jax.random.uniform(kb, (1, fan_out), jnp.float32, -bound, bound)
        params.append((w, b))
    return params


def pack_params(params, weight_dtype=jnp.float32):
    """Pack per-layer (W, b) into zero-padded slabs:
         w_slab: (L, P, P)  with W_i in [:in_i, :out_i]   (weight_dtype)
         b_slab: (L, 1, P)  with b_i in [:, :out_i]       (f32)
       P = round_up(max dim, 128) so every slice is lane-aligned.
       Use weight_dtype=jnp.bfloat16 on v6e/v7x to halve slab DMA/VMEM."""
    max_dim = max(max(w.shape) for w, _ in params)
    P = _round_up(max_dim, 128)
    L = len(params)
    w_slab = jnp.zeros((L, P, P), weight_dtype)
    b_slab = jnp.zeros((L, 1, P), jnp.float32)
    for i, (w, b) in enumerate(params):
        fi, fo = w.shape
        w_slab = w_slab.at[i, :fi, :fo].set(w.astype(weight_dtype))
        b_slab = b_slab.at[i, 0, :fo].set(b.reshape(-1).astype(jnp.float32))
    return w_slab, b_slab


# --------------------------------------------------------------------------
# Pure-JAX reference (uses the unpacked params)
# --------------------------------------------------------------------------
def hd_pred_reference(f1, f2, f3, f4, f5, f6, f7, f8, f9, params):
    x = jnp.stack([f1, f2, f3, f4, f5, f6, f7, f8, f9], axis=1).astype(jnp.float32)
    for w, b in params:
        x = jnp.maximum(x @ w + b, 0.0)
    return x


if __name__ == "__main__":
    hidden_size = 32
    batch = 8

    key = jax.random.PRNGKey(0)
    key, kf = jax.random.split(key)
    feats = jax.random.normal(kf, (9, batch), jnp.float32)
    f1, f2, f3, f4, f5, f6, f7, f8, f9 = [feats[i] for i in range(9)]

    params = init_params(hidden_size, key)
    # Pack once (hoisted out of any hot loop).  Keep f32 here so the 1e-5
    # tolerance against the f32 reference holds; use bf16 on v6e/v7x in prod.
    w_slab, b_slab = pack_params(params, weight_dtype=jnp.float32)

    out = hd_pred_pallas(f1, f2, f3, f4, f5, f6, f7, f8, f9, w_slab, b_slab)
    out = jax.block_until_ready(out)

    ref = hd_pred_reference(f1, f2, f3, f4, f5, f6, f7, f8, f9, params)
    assert out.shape == (batch, 1), out.shape
    assert jnp.allclose(out, ref, atol=1e-5, rtol=1e-5), (out, ref)

    print("KERNEL_OK")
</pallas_src>

<mosaic_0001>
module attributes {stable_mosaic.version = 11 : i64} {
  func.func @_hd_pred_kernel(%arg0: i32, %arg1: memref<8x16xf32, #tpu.memory_space<vmem>>, %arg2: memref<8x128x128xf32, #tpu.memory_space<vmem>>, %arg3: memref<8x1x128xf32, #tpu.memory_space<vmem>>, %arg4: memref<8x1xf32, #tpu.memory_space<vmem>>) attributes {dimension_semantics = [#tpu.dimension_semantics<parallel>], iteration_bounds = array<i64: 1>, scalar_prefetch = 0 : i64, scratch_operands = 0 : i64, tpu.core_type = #tpu.core_type<tc>, window_params = [{transform_indices = @transform_0, window_bounds = array<i64: 8, 16>}, {pipeline_mode = #tpu.pipeline_mode<synchronous>, transform_indices = @transform_1, window_bounds = array<i64: 8, 128, 128>}, {pipeline_mode = #tpu.pipeline_mode<synchronous>, transform_indices = @transform_2, window_bounds = array<i64: 8, 1, 128>}, {transform_indices = @transform_3, window_bounds = array<i64: 8, 1>}]} {
    %c0 = arith.constant 0 : index
    %c0_0 = arith.constant 0 : index
    %0 = vector.load %arg1[%c0, %c0_0] : memref<8x16xf32, #tpu.memory_space<vmem>>, vector<8x16xf32>
    %c0_1 = arith.constant 0 : index
    %c0_2 = arith.constant 0 : index
    %c0_3 = arith.constant 0 : index
    %1 = vector.load %arg2[%c0_1, %c0_2, %c0_3] : memref<8x128x128xf32, #tpu.memory_space<vmem>>, vector<1x16x128xf32>
    %2 = vector.shape_cast %1 : vector<1x16x128xf32> to vector<16x128xf32>
    %cst = arith.constant dense<0.000000e+00> : vector<8x128xf32>
    %3 = tpu.matmul %0, %2, %cst {dimension_numbers = #tpu.dot_dimension_numbers<[1], [0], [0], [1], [0, 0, 1, 1], [], []>} : vector<8x16xf32>, vector<16x128xf32>, vector<8x128xf32> -> vector<8x128xf32>
    %c0_4 = arith.constant 0 : index
    %c0_5 = arith.constant 0 : index
    %c0_6 = arith.constant 0 : index
    %4 = vector.load %arg3[%c0_4, %c0_5, %c0_6] : memref<8x1x128xf32, #tpu.memory_space<vmem>>, vector<1x1x128xf32>
    %5 = vector.shape_cast %4 : vector<1x1x128xf32> to vector<1x128xf32>
    %6 = vector.broadcast %5 : vector<1x128xf32> to vector<8x128xf32>
    %7 = arith.addf %3, %6 : vector<8x128xf32>
    %cst_7 = arith.constant 0.000000e+00 : f32
    %8 = vector.broadcast %cst_7 : f32 to vector<8x128xf32>
    %9 = arith.maximumf %7, %8 : vector<8x128xf32>
    %c1 = arith.constant 1 : index
    %c0_8 = arith.constant 0 : index
    %c0_9 = arith.constant 0 : index
    %10 = vector.load %arg2[%c1, %c0_8, %c0_9] : memref<8x128x128xf32, #tpu.memory_space<vmem>>, vector<1x128x128xf32>
    %11 = vector.shape_cast %10 : vector<1x128x128xf32> to vector<128x128xf32>
    %cst_10 = arith.constant dense<0.000000e+00> : vector<8x128xf32>
    %12 = tpu.matmul %9, %11, %cst_10 {dimension_numbers = #tpu.dot_dimension_numbers<[1], [0], [0], [1], [0, 0, 1, 1], [], []>} : vector<8x128xf32>, vector<128x128xf32>, vector<8x128xf32> -> vector<8x128xf32>
    %c1_11 = arith.constant 1 : index
    %c0_12 = arith.constant 0 : index
    %c0_13 = arith.constant 0 : index
    %13 = vector.load %arg3[%c1_11, %c0_12, %c0_13] : memref<8x1x128xf32, #tpu.memory_space<vmem>>, vector<1x1x128xf32>
    %14 = vector.shape_cast %13 : vector<1x1x128xf32> to vector<1x128xf32>
    %15 = vector.broadcast %14 : vector<1x128xf32> to vector<8x128xf32>
    %16 = arith.addf %12, %15 : vector<8x128xf32>
    %cst_14 = arith.constant 0.000000e+00 : f32
    %17 = vector.broadcast %cst_14 : f32 to vector<8x128xf32>
    %18 = arith.maximumf %16, %17 : vector<8x128xf32>
    %c2 = arith.constant 2 : index
    %c0_15 = arith.constant 0 : index
    %c0_16 = arith.constant 0 : index
    %19 = vector.load %arg2[%c2, %c0_15, %c0_16] : memref<8x128x128xf32, #tpu.memory_space<vmem>>, vector<1x128x128xf32>
    %20 = vector.shape_cast %19 : vector<1x128x128xf32> to vector<128x128xf32>
    %cst_17 = arith.constant dense<0.000000e+00> : vector<8x128xf32>
    %21 = tpu.matmul %18, %20, %cst_17 {dimension_numbers = #tpu.dot_dimension_numbers<[1], [0], [0], [1], [0, 0, 1, 1], [], []>} : vector<8x128xf32>, vector<128x128xf32>, vector<8x128xf32> -> vector<8x128xf32>
    %c2_18 = arith.constant 2 : index
    %c0_19 = arith.constant 0 : index
    %c0_20 = arith.constant 0 : index
    %22 = vector.load %arg3[%c2_18, %c0_19, %c0_20] : memref<8x1x128xf32, #tpu.memory_space<vmem>>, vector<1x1x128xf32>
    %23 = vector.shape_cast %22 : vector<1x1x128xf32> to vector<1x128xf32>
    %24 = vector.broadcast %23 : vector<1x128xf32> to vector<8x128xf32>
    %25 = arith.addf %21, %24 : vector<8x128xf32>
    %cst_21 = arith.constant 0.000000e+00 : f32
    %26 = vector.broadcast %cst_21 : f32 to vector<8x128xf32>
    %27 = arith.maximumf %25, %26 : vector<8x128xf32>
    %c3 = arith.constant 3 : index
    %c0_22 = arith.constant 0 : index
    %c0_23 = arith.constant 0 : index
    %28 = vector.load %arg2[%c3, %c0_22, %c0_23] : memref<8x128x128xf32, #tpu.memory_space<vmem>>, vector<1x128x128xf32>
    %29 = vector.shape_cast %28 : vector<1x128x128xf32> to vector<128x128xf32>
    %cst_24 = arith.constant dense<0.000000e+00> : vector<8x128xf32>
    %30 = tpu.matmul %27, %29, %cst_24 {dimension_numbers = #tpu.dot_dimension_numbers<[1], [0], [0], [1], [0, 0, 1, 1], [], []>} : vector<8x128xf32>, vector<128x128xf32>, vector<8x128xf32> -> vector<8x128xf32>
    %c3_25 = arith.constant 3 : index
    %c0_26 = arith.constant 0 : index
    %c0_27 = arith.constant 0 : index
    %31 = vector.load %arg3[%c3_25, %c0_26, %c0_27] : memref<8x1x128xf32, #tpu.memory_space<vmem>>, vector<1x1x128xf32>
    %32 = vector.shape_cast %31 : vector<1x1x128xf32> to vector<1x128xf32>
    %33 = vector.broadcast %32 : vector<1x128xf32> to vector<8x128xf32>
    %34 = arith.addf %30, %33 : vector<8x128xf32>
    %cst_28 = arith.constant 0.000000e+00 : f32
    %35 = vector.broadcast %cst_28 : f32 to vector<8x128xf32>
    %36 = arith.maximumf %34, %35 : vector<8x128xf32>
    %c4 = arith.constant 4 : index
    %c0_29 = arith.constant 0 : index
    %c0_30 = arith.constant 0 : index
    %37 = vector.load %arg2[%c4, %c0_29, %c0_30] : memref<8x128x128xf32, #tpu.memory_space<vmem>>, vector<1x128x128xf32>
    %38 = vector.shape_cast %37 : vector<1x128x128xf32> to vector<128x128xf32>
    %cst_31 = arith.constant dense<0.000000e+00> : vector<8x128xf32>
    %39 = tpu.matmul %36, %38, %cst_31 {dimension_numbers = #tpu.dot_dimension_numbers<[1], [0], [0], [1], [0, 0, 1, 1], [], []>} : vector<8x128xf32>, vector<128x128xf32>, vector<8x128xf32> -> vector<8x128xf32>
    %c4_32 = arith.constant 4 : index
    %c0_33 = arith.constant 0 : index
    %c0_34 = arith.constant 0 : index
    %40 = vector.load %arg3[%c4_32, %c0_33, %c0_34] : memref<8x1x128xf32, #tpu.memory_space<vmem>>, vector<1x1x128xf32>
    %41 = vector.shape_cast %40 : vector<1x1x128xf32> to vector<1x128xf32>
    %42 = vector.broadcast %41 : vector<1x128xf32> to vector<8x128xf32>
    %43 = arith.addf %39, %42 : vector<8x128xf32>
    %cst_35 = arith.constant 0.000000e+00 : f32
    %44 = vector.broadcast %cst_35 : f32 to vector<8x128xf32>
    %45 = arith.maximumf %43, %44 : vector<8x128xf32>
    %c5 = arith.constant 5 : index
    %c0_36 = arith.constant 0 : index
    %c0_37 = arith.constant 0 : index
    %46 = vector.load %arg2[%c5, %c0_36, %c0_37] : memref<8x128x128xf32, #tpu.memory_space<vmem>>, vector<1x128x128xf32>
    %47 = vector.shape_cast %46 : vector<1x128x128xf32> to vector<128x128xf32>
    %cst_38 = arith.constant dense<0.000000e+00> : vector<8x128xf32>
    %48 = tpu.matmul %45, %47, %cst_38 {dimension_numbers = #tpu.dot_dimension_numbers<[1], [0], [0], [1], [0, 0, 1, 1], [], []>} : vector<8x128xf32>, vector<128x128xf32>, vector<8x128xf32> -> vector<8x128xf32>
    %c5_39 = arith.constant 5 : index
    %c0_40 = arith.constant 0 : index
    %c0_41 = arith.constant 0 : index
    %49 = vector.load %arg3[%c5_39, %c0_40, %c0_41] : memref<8x1x128xf32, #tpu.memory_space<vmem>>, vector<1x1x128xf32>
    %50 = vector.shape_cast %49 : vector<1x1x128xf32> to vector<1x128xf32>
    %51 = vector.broadcast %50 : vector<1x128xf32> to vector<8x128xf32>
    %52 = arith.addf %48, %51 : vector<8x128xf32>
    %cst_42 = arith.constant 0.000000e+00 : f32
    %53 = vector.broadcast %cst_42 : f32 to vector<8x128xf32>
    %54 = arith.maximumf %52, %53 : vector<8x128xf32>
    %c6 = arith.constant 6 : index
    %c0_43 = arith.constant 0 : index
    %c0_44 = arith.constant 0 : index
    %55 = vector.load %arg2[%c6, %c0_43, %c0_44] : memref<8x128x128xf32, #tpu.memory_space<vmem>>, vector<1x128x128xf32>
    %56 = vector.shape_cast %55 : vector<1x128x128xf32> to vector<128x128xf32>
    %cst_45 = arith.constant dense<0.000000e+00> : vector<8x128xf32>
    %57 = tpu.matmul %54, %56, %cst_45 {dimension_numbers = #tpu.dot_dimension_numbers<[1], [0], [0], [1], [0, 0, 1, 1], [], []>} : vector<8x128xf32>, vector<128x128xf32>, vector<8x128xf32> -> vector<8x128xf32>
    %c6_46 = arith.constant 6 : index
    %c0_47 = arith.constant 0 : index
    %c0_48 = arith.constant 0 : index
    %58 = vector.load %arg3[%c6_46, %c0_47, %c0_48] : memref<8x1x128xf32, #tpu.memory_space<vmem>>, vector<1x1x128xf32>
    %59 = vector.shape_cast %58 : vector<1x1x128xf32> to vector<1x128xf32>
    %60 = vector.broadcast %59 : vector<1x128xf32> to vector<8x128xf32>
    %61 = arith.addf %57, %60 : vector<8x128xf32>
    %cst_49 = arith.constant 0.000000e+00 : f32
    %62 = vector.broadcast %cst_49 : f32 to vector<8x128xf32>
    %63 = arith.maximumf %61, %62 : vector<8x128xf32>
    %c7 = arith.constant 7 : index
    %c0_50 = arith.constant 0 : index
    %c0_51 = arith.constant 0 : index
    %64 = vector.load %arg2[%c7, %c0_50, %c0_51] : memref<8x128x128xf32, #tpu.memory_space<vmem>>, vector<1x128x128xf32>
    %65 = vector.shape_cast %64 : vector<1x128x128xf32> to vector<128x128xf32>
    %cst_52 = arith.constant dense<0.000000e+00> : vector<8x128xf32>
    %66 = tpu.matmul %63, %65, %cst_52 {dimension_numbers = #tpu.dot_dimension_numbers<[1], [0], [0], [1], [0, 0, 1, 1], [], []>} : vector<8x128xf32>, vector<128x128xf32>, vector<8x128xf32> -> vector<8x128xf32>
    %c7_53 = arith.constant 7 : index
    %c0_54 = arith.constant 0 : index
    %c0_55 = arith.constant 0 : index
    %67 = vector.load %arg3[%c7_53, %c0_54, %c0_55] : memref<8x1x128xf32, #tpu.memory_space<vmem>>, vector<1x1x128xf32>
    %68 = vector.shape_cast %67 : vector<1x1x128xf32> to vector<1x128xf32>
    %69 = vector.broadcast %68 : vector<1x128xf32> to vector<8x128xf32>
    %70 = arith.addf %66, %69 : vector<8x128xf32>
    %cst_56 = arith.constant 0.000000e+00 : f32
    %71 = vector.broadcast %cst_56 : f32 to vector<8x128xf32>
    %72 = arith.maximumf %70, %71 : vector<8x128xf32>
    %73 = vector.extract_strided_slice %72 {offsets = [0, 0], sizes = [8, 1], strides = [1, 1]} : vector<8x128xf32> to vector<8x1xf32>
    %c0_57 = arith.constant 0 : index
    %c0_58 = arith.constant 0 : index
    %74 = vector.load %arg4[%c0_57, %c0_58] : memref<8x1xf32, #tpu.memory_space<vmem>>, vector<8x1xf32>
    tpu.vector_store %arg4[%c0_57, %c0_58], %73 {strides = array<i32>} : memref<8x1xf32, #tpu.memory_space<vmem>>, vector<8x1xf32>,
    return
  }
  func.func @transform_0(%arg0: i32) -> (i32, i32) {
    %c0_i32 = arith.constant 0 : i32
    %c0_i32_0 = arith.constant 0 : i32
    return %arg0, %c0_i32 : i32, i32
  }
  func.func @transform_1(%arg0: i32) -> (i32, i32, i32) {
    %c0_i32 = arith.constant 0 : i32
    %c0_i32_0 = arith.constant 0 : i32
    %c0_i32_1 = arith.constant 0 : i32
    %c0_i32_2 = arith.constant 0 : i32
    return %c0_i32, %c0_i32_0, %c0_i32_1 : i32, i32, i32
  }
  func.func @transform_2(%arg0: i32) -> (i32, i32, i32) {
    %c0_i32 = arith.constant 0 : i32
    %c0_i32_0 = arith.constant 0 : i32
    %c0_i32_1 = arith.constant 0 : i32
    %c0_i32_2 = arith.constant 0 : i32
    return %c0_i32, %c0_i32_0, %c0_i32_1 : i32, i32, i32
  }
  func.func @transform_3(%arg0: i32) -> (i32, i32) {
    %c0_i32 = arith.constant 0 : i32
    %c0_i32_0 = arith.constant 0 : i32
    return %arg0, %c0_i32 : i32, i32
  }
}

</mosaic_0001>

<llo_original>
// kernel: tpu_custom_call.1
$region0: #{tpu_custom_call.1}
  #allocation0 [shape = 'u32[]', space=smem, size = 0x4, offset = 0x4, fixed_abs, tag = 'smem constant byte address 0x4 - core index']
  #allocation1 [shape = 'u32[144,128]{1,0:T(1,128)}', space=vmem, size = 0x12000, scoped, tag = 'internal scratch']
  %s0 = inlined_call_operand.hbm [shape: f32[8,16], index: 0, kind: input, shape index: {}]
  %s1 = inlined_call_operand.hbm [shape: f32[8,128,128], index: 1, kind: input, shape index: {}]
  %s2 = inlined_call_operand.hbm [shape: f32[8,1,128], index: 2, kind: input, shape index: {}]
  %s3 = inlined_call_operand.vmem [shape: f32[8,1], index: 3, kind: output, shape index: {}]
  %s4 = sld [smem:[#allocation0]]
  $region34: #{tpu_custom_call.1} parent=0
    _
  %s6 = ssub.s32 1, %s4
  %s7 = scalar_select 0, %s6, %s4
  $region1: #{tpu_custom_call.1} parent=0
    #allocation2 [shape = 'u8[4096]{0}', space=vmem, size = 0x1000, scoped, tag = 'input window, operand 0, single buffered']
    #allocation3 [shape = 's32[1]{0}', space=sflag, size = 0x4, scoped, tag = 'scoped memory for tpu_custom_call.1']
    #allocation4 [shape = 'u8[524288]{0}', space=vmem, size = 0x80000, scoped, tag = 'input window, operand 1, single buffered']
    #allocation5 [shape = 's32[1]{0}', space=sflag, size = 0x4, scoped, tag = 'scoped memory for tpu_custom_call.1']
    #allocation6 [shape = 'u8[4096]{0}', space=vmem, size = 0x1000, scoped, tag = 'input window, operand 2, single buffered']
    %8 = vsyncpa [#allocation3], 0
    %9 = vsyncpa [#allocation5], 0
    // Predicated region
    $region2: #{tpu_custom_call.1} parent=1 // pred_check
      _
    $region3: #{tpu_custom_call.1} parent=1 // pred_check_branch
      %11 = sbr.rel (0) target = $region5
    $region4: #{tpu_custom_call.1} parent=1 // pred_region
      %s13 = ssub.s32 128, 128
      %14 = vsyncadd [#allocation3], %s13
      %s16 = sshll.u32 [#allocation2], 4
      %s17 = int_to_ptr.vmem [resolvable:$true] %s16
      %19 = dma.hbm_to_vmem [thread:$0]  %s0, 128, %s17, [#allocation3]
    $region5: #{tpu_custom_call.1} parent=1 // pred_fallthru
      _
    // Predicated region
    $region6: #{tpu_custom_call.1} parent=1 // pred_check
      _
    $region7: #{tpu_custom_call.1} parent=1 // pred_check_branch
      %21 = sbr.rel (0) target = $region9
    $region8: #{tpu_custom_call.1} parent=1 // pred_region
      %s23 = ssub.s32 16384, 16384
      %24 = vsyncadd [#allocation5], %s23
      %s25 = sshll.u32 [#allocation4], 4
      %s26 = int_to_ptr.vmem [resolvable:$true] %s25
      %31 = dma.hbm_to_vmem [thread:$0]  %s1, 16384, %s26, [#allocation5], 128, 128, 8
    $region9: #{tpu_custom_call.1} parent=1 // pred_fallthru
      _
    // Predicated region
    $region10: #{tpu_custom_call.1} parent=1 // pred_check
      _
    $region11: #{tpu_custom_call.1} parent=1 // pred_check_branch
      %33 = sbr.rel (0) target = $region13
    $region12: #{tpu_custom_call.1} parent=1 // pred_region
      %s35 = ssub.s32 128, 128
      %36 = vsyncadd [#allocation5], %s35
      %s37 = sshll.u32 [#allocation6], 4
      %s38 = int_to_ptr.vmem [resolvable:$true] %s37
      %43 = dma.hbm_to_vmem [thread:$0]  %s2, 128, %s38, [#allocation5], 16, 16, 1
    $region13: #{tpu_custom_call.1} parent=1 // pred_fallthru
      _
    // Predicated region
    $region14: #{tpu_custom_call.1} parent=1 // pred_check
      _
    $region15: #{tpu_custom_call.1} parent=1 // pred_check_branch
      %45 = sbr.rel (0) target = $region17
    $region16: #{tpu_custom_call.1} parent=1 // pred_region
      %46 = dma.done [#allocation3], 128
    $region17: #{tpu_custom_call.1} parent=1 // pred_fallthru
      _
    // Predicated region
    $region18: #{tpu_custom_call.1} parent=1 // pred_check
      _
    $region19: #{tpu_custom_call.1} parent=1 // pred_check_branch
      %48 = sbr.rel (0) target = $region21
    $region20: #{tpu_custom_call.1} parent=1 // pred_region
      %49 = dma.done [#allocation5], 16384
    $region21: #{tpu_custom_call.1} parent=1 // pred_fallthru
      _
    // Predicated region
    $region22: #{tpu_custom_call.1} parent=1 // pred_check
      _
    $region23: #{tpu_custom_call.1} parent=1 // pred_check_branch
      %51 = sbr.rel (0) target = $region25
    $region24: #{tpu_custom_call.1} parent=1 // pred_region
      %52 = dma.done [#allocation5], 128
    $region25: #{tpu_custom_call.1} parent=1 // pred_fallthru
      _
    %v53 = vld [vmem:[#allocation2] sm:$0xff]
    %v54 = vld [vmem:[#allocation4] sm:$0xff]
    %v55 = vld [vmem:[#allocation4 + $0x8] sm:$0xff]
    %v56 = vld [vmem:[#allocation6] sm:$0x1]
    %v58 = vlaneseq
    %v59 = vshrl.u32 %v58, 7
    %v60 = vsub.s32 0, %v59
    %v61 = vrot.slane %v56, %v60
    %vm63 = vcmask 130048
    %v65 = vsel %vm63, %v53, 0
    %67 = vmatprep.subr.mxu0 0.0
    %68 = vmatpush1.msra.mxu0 0.0
    %69 = vmatprep.subr.mxu0 0.0
    %70 = vmatpush1.msra.mxu0 0.0
    %71 = vmatprep.subr.mxu0 0.0
    %72 = vmatpush1.msra.mxu0 0.0
    %73 = vmatprep.subr.mxu0 0.0
    %74 = vmatpush1.msra.mxu0 0.0
    %75 = vmatprep.subr.mxu0 0.0
    %76 = vmatpush1.msra.mxu0 0.0
    %77 = vmatprep.subr.mxu0 0.0
    %78 = vmatpush1.msra.mxu0 0.0
    %79 = vmatprep.subr.mxu0 0.0
    %80 = vmatpush1.msra.mxu0 0.0
    %81 = vmatprep.subr.mxu0 0.0
    %82 = vmatpush1.msra.mxu0 0.0
    %83 = vmatprep.subr.mxu0 0.0
    %84 = vmatpush1.msra.mxu0 0.0
    %85 = vmatprep.subr.mxu0 0.0
    %86 = vmatpush1.msra.mxu0 0.0
    %87 = vmatprep.subr.mxu0 0.0
    %88 = vmatpush1.msra.mxu0 0.0
    %89 = vmatprep.subr.mxu0 0.0
    %90 = vmatpush1.msra.mxu0 0.0
    %91 = vmatprep.subr.mxu0 0.0
    %92 = vmatpush1.msra.mxu0 0.0
    %93 = vmatprep.subr.mxu0 0.0
    %94 = vmatpush1.msra.mxu0 0.0
    %95 = vmatprep.subr.mxu0 0.0
    %96 = vmatpush1.msra.mxu0 %v55
    %97 = vmatprep.subr.mxu0 0.0
    %98 = vmatpush1.msra.mxu0 %v54
    %99 = vmatprep.subr.mxu0 0.0
    %100 = vmatpush2.msra.mxu0 0.0
    %101 = vmatprep.subr.mxu0 0.0
    %102 = vmatpush2.msra.mxu0 0.0
    %103 = vmatprep.subr.mxu0 0.0
    %104 = vmatpush2.msra.mxu0 0.0
    %105 = vmatprep.subr.mxu0 0.0
    %106 = vmatpush2.msra.mxu0 0.0
    %107 = vmatprep.subr.mxu0 0.0
    %108 = vmatpush2.msra.mxu0 0.0
    %109 = vmatprep.subr.mxu0 0.0
    %110 = vmatpush2.msra.mxu0 0.0
    %111 = vmatprep.subr.mxu0 0.0
    %112 = vmatpush2.msra.mxu0 0.0
    %113 = vmatprep.subr.mxu0 0.0
    %114 = vmatpush2.msra.mxu0 0.0
    %115 = vmatprep.subr.mxu0 0.0
    %116 = vmatpush2.msra.mxu0 0.0
    %117 = vmatprep.subr.mxu0 0.0
    %118 = vmatpush2.msra.mxu0 0.0
    %119 = vmatprep.subr.mxu0 0.0
    %120 = vmatpush2.msra.mxu0 0.0
    %121 = vmatprep.subr.mxu0 0.0
    %122 = vmatpush2.msra.mxu0 0.0
    %123 = vmatprep.subr.mxu0 0.0
    %124 = vmatpush2.msra.mxu0 0.0
    %125 = vmatprep.subr.mxu0 0.0
    %126 = vmatpush2.msra.mxu0 0.0
    %127 = vmatprep.subr.mxu0 0.0
    %128 = vmatpush2.msra.mxu0 0.0
    %129 = vmatprep.subr.mxu0 0.0
    %130 = vmatpush2.msra.mxu0 0.0
    %131 = vmatprep.mubr.f32.mxu0 0.0
    %132 = vmatmul.mubr.f32.gmra.mxu0 %v65
    %v133 = vpop.f32.mrf.mxu0
    %v134 = vadd.f32 %v61, %v133
    %v135 = vpop.f32.mrf.mxu0
    %136 = vdwg.mxu0
    %v137 = vmax.f32 %v134, 0.0
    %s138 = scalar_lea.vmem [#allocation4], 128
    %v139 = vld [vmem:[%s138] sm:$0xff]
    %v140 = vld [vmem:[%s138 + $0x8] sm:$0xff]
    %v141 = vld [vmem:[%s138 + $0x10] sm:$0xff]
    %v142 = vld [vmem:[%s138 + $0x18] sm:$0xff]
    %v143 = vld [vmem:[%s138 + $0x20] sm:$0xff]
    %v144 = vld [vmem:[%s138 + $0x28] sm:$0xff]
    %v145 = vld [vmem:[%s138 + $0x30] sm:$0xff]
    %v146 = vld [vmem:[%s138 + $0x38] sm:$0xff]
    %v147 = vld [vmem:[%s138 + $0x40] sm:$0xff]
    %v148 = vld [vmem:[%s138 + $0x48] sm:$0xff]
    %v149 = vld [vmem:[%s138 + $0x50] sm:$0xff]
    %v150 = vld [vmem:[%s138 + $0x58] sm:$0xff]
    %v151 = vld [vmem:[%s138 + $0x60] sm:$0xff]
    %v152 = vld [vmem:[%s138 + $0x68] sm:$0xff]
    %v153 = vld [vmem:[%s138 + $0x70] sm:$0xff]
    %v154 = vld [vmem:[%s138 + $0x78] sm:$0xff]
    %s155 = scalar_lea.vmem [#allocation6], 1
    %v156 = vld [vmem:[%s155] sm:$0x1]
    %v158 = vlaneseq
    %v159 = vshrl.u32 %v158, 7
    %v160 = vsub.s32 0, %v159
    %v161 = vrot.slane %v156, %v160
    %163 = vmatprep.subr.mxu0 0.0
    %164 = vmatpush1.msra.mxu0 %v154
    %165 = vmatprep.subr.mxu0 0.0
    %166 = vmatpush1.msra.mxu0 %v153
    %167 = vmatprep.subr.mxu0 0.0
    %168 = vmatpush1.msra.mxu0 %v152
    %169 = vmatprep.subr.mxu0 0.0
    %170 = vmatpush1.msra.mxu0 %v151
    %171 = vmatprep.subr.mxu0 0.0
    %172 = vmatpush1.msra.mxu0 %v150
    %173 = vmatprep.subr.mxu0 0.0
    %174 = vmatpush1.msra.mxu0 %v149
    %175 = vmatprep.subr.mxu0 0.0
    %176 = vmatpush1.msra.mxu0 %v148
    %177 = vmatprep.subr.mxu0 0.0
    %178 = vmatpush1.msra.mxu0 %v147
    %179 = vmatprep.subr.mxu0 0.0
    %180 = vmatpush1.msra.mxu0 %v146
    %181 = vmatprep.subr.mxu0 0.0
    %182 = vmatpush1.msra.mxu0 %v145
    %183 = vmatprep.subr.mxu0 0.0
    %184 = vmatpush1.msra.mxu0 %v144
    %185 = vmatprep.subr.mxu0 0.0
    %186 = vmatpush1.msra.mxu0 %v143
    %187 = vmatprep.subr.mxu0 0.0
    %188 = vmatpush1.msra.mxu0 %v142
    %189 = vmatprep.subr.mxu0 0.0
    %190 = vmatpush1.msra.mxu0 %v141
    %191 = vmatprep.subr.mxu0 0.0
    %192 = vmatpush1.msra.mxu0 %v140
    %193 = vmatprep.subr.mxu0 0.0
    %194 = vmatpush1.msra.mxu0 %v139
    %195 = vmatprep.subr.mxu0 0.0
    %196 = vmatpush2.msra.mxu0 0.0
    %197 = vmatprep.subr.mxu0 0.0
    %198 = vmatpush2.msra.mxu0 0.0
    %199 = vmatprep.subr.mxu0 0.0
    %200 = vmatpush2.msra.mxu0 0.0
    %201 = vmatprep.subr.mxu0 0.0
    %202 = vmatpush2.msra.mxu0 0.0
    %203 = vmatprep.subr.mxu0 0.0
    %204 = vmatpush2.msra.mxu0 0.0
    %205 = vmatprep.subr.mxu0 0.0
    %206 = vmatpush2.msra.mxu0 0.0
    %207 = vmatprep.subr.mxu0 0.0
    %208 = vmatpush2.msra.mxu0 0.0
    %209 = vmatprep.subr.mxu0 0.0
    %210 = vmatpush2.msra.mxu0 0.0
    %211 = vmatprep.subr.mxu0 0.0
    %212 = vmatpush2.msra.mxu0 0.0
    %213 = vmatprep.subr.mxu0 0.0
    %214 = vmatpush2.msra.mxu0 0.0
    %215 = vmatprep.subr.mxu0 0.0
    %216 = vmatpush2.msra.mxu0 0.0
    %217 = vmatprep.subr.mxu0 0.0
    %218 = vmatpush2.msra.mxu0 0.0
    %219 = vmatprep.subr.mxu0 0.0
    %220 = vmatpush2.msra.mxu0 0.0
    %221 = vmatprep.subr.mxu0 0.0
    %222 = vmatpush2.msra.mxu0 0.0
    %223 = vmatprep.subr.mxu0 0.0
    %224 = vmatpush2.msra.mxu0 0.0
    %225 = vmatprep.subr.mxu0 0.0
    %226 = vmatpush2.msra.mxu0 0.0
    %227 = vmatprep.mubr.f32.mxu0 0.0
    %228 = vmatmul.mubr.f32.gmra.mxu0 %v137
    %v229 = vpop.f32.mrf.mxu0
    %v230 = vadd.f32 %v161, %v229
    %v231 = vpop.f32.mrf.mxu0
    %232 = vdwg.mxu0
    %v233 = vmax.f32 %v230, 0.0
    %s234 = scalar_lea.vmem [#allocation4], 256
    %v235 = vld [vmem:[%s234] sm:$0xff]
    %v236 = vld [vmem:[%s234 + $0x8] sm:$0xff]
    %v237 = vld [vmem:[%s234 + $0x10] sm:$0xff]
    %v238 = vld [vmem:[%s234 + $0x18] sm:$0xff]
    %v239 = vld [vmem:[%s234 + $0x20] sm:$0xff]
    %v240 = vld [vmem:[%s234 + $0x28] sm:$0xff]
    %v241 = vld [vmem:[%s234 + $0x30] sm:$0xff]
    %v242 = vld [vmem:[%s234 + $0x38] sm:$0xff]
    %v243 = vld [vmem:[%s234 + $0x40] sm:$0xff]
    %v244 = vld [vmem:[%s234 + $0x48] sm:$0xff]
    %v245 = vld [vmem:[%s234 + $0x50] sm:$0xff]
    %v246 = vld [vmem:[%s234 + $0x58] sm:$0xff]
    %v247 = vld [vmem:[%s234 + $0x60] sm:$0xff]
    %v248 = vld [vmem:[%s234 + $0x68] sm:$0xff]
    %v249 = vld [vmem:[%s234 + $0x70] sm:$0xff]
    %v250 = vld [vmem:[%s234 + $0x78] sm:$0xff]
    %s251 = scalar_lea.vmem [#allocation6], 2
    %v252 = vld [vmem:[%s251] sm:$0x1]
    %v254 = vlaneseq
    %v255 = vshrl.u32 %v254, 7
    %v256 = vsub.s32 0, %v255
    %v257 = vrot.slane %v252, %v256
    %259 = vmatprep.subr.mxu0 0.0
    %260 = vmatpush1.msra.mxu0 %v250
    %261 = vmatprep.subr.mxu0 0.0
    %262 = vmatpush1.msra.mxu0 %v249
    %263 = vmatprep.subr.mxu0 0.0
    %264 = vmatpush1.msra.mxu0 %v248
    %265 = vmatprep.subr.mxu0 0.0
    %266 = vmatpush1.msra.mxu0 %v247
    %267 = vmatprep.subr.mxu0 0.0
    %268 = vmatpush1.msra.mxu0 %v246
    %269 = vmatprep.subr.mxu0 0.0
    %270 = vmatpush1.msra.mxu0 %v245
    %271 = vmatprep.subr.mxu0 0.0
    %272 = vmatpush1.msra.mxu0 %v244
    %273 = vmatprep.subr.mxu0 0.0
    %274 = vmatpush1.msra.mxu0 %v243
    %275 = vmatprep.subr.mxu0 0.0
    %276 = vmatpush1.msra.mxu0 %v242
    %277 = vmatprep.subr.mxu0 0.0
    %278 = vmatpush1.msra.mxu0 %v241
    %279 = vmatprep.subr.mxu0 0.0
    %280 = vmatpush1.msra.mxu0 %v240
    %281 = vmatprep.subr.mxu0 0.0
    %282 = vmatpush1.msra.mxu0 %v239
    %283 = vmatprep.subr.mxu0 0.0
    %284 = vmatpush1.msra.mxu0 %v238
    %285 = vmatprep.subr.mxu0 0.0
    %286 = vmatpush1.msra.mxu0 %v237
    %287 = vmatprep.subr.mxu0 0.0
    %288 = vmatpush1.msra.mxu0 %v236
    %289 = vmatprep.subr.mxu0 0.0
    %290 = vmatpush1.msra.mxu0 %v235
    %291 = vmatprep.subr.mxu0 0.0
    %292 = vmatpush2.msra.mxu0 0.0
    %293 = vmatprep.subr.mxu0 0.0
    %294 = vmatpush2.msra.mxu0 0.0
    %295 = vmatprep.subr.mxu0 0.0
    %296 = vmatpush2.msra.mxu0 0.0
    %297 = vmatprep.subr.mxu0 0.0
    %298 = vmatpush2.msra.mxu0 0.0
    %299 = vmatprep.subr.mxu0 0.0
    %300 = vmatpush2.msra.mxu0 0.0
    %301 = vmatprep.subr.mxu0 0.0
    %302 = vmatpush2.msra.mxu0 0.0
    %303 = vmatprep.subr.mxu0 0.0
    %304 = vmatpush2.msra.mxu0 0.0
    %305 = vmatprep.subr.mxu0 0.0
    %306 = vmatpush2.msra.mxu0 0.0
    %307 = vmatprep.subr.mxu0 0.0
    %308 = vmatpush2.msra.mxu0 0.0
    %309 = vmatprep.subr.mxu0 0.0
    %310 = vmatpush2.msra.mxu0 0.0
    %311 = vmatprep.subr.mxu0 0.0
    %312 = vmatpush2.msra.mxu0 0.0
    %313 = vmatprep.subr.mxu0 0.0
    %314 = vmatpush2.msra.mxu0 0.0
    %315 = vmatprep.subr.mxu0 0.0
    %316 = vmatpush2.msra.mxu0 0.0
    %317 = vmatprep.subr.mxu0 0.0
    %318 = vmatpush2.msra.mxu0 0.0
    %319 = vmatprep.subr.mxu0 0.0
    %320 = vmatpush2.msra.mxu0 0.0
    %321 = vmatprep.subr.mxu0 0.0
    %322 = vmatpush2.msra.mxu0 0.0
    %323 = vmatprep.mubr.f32.mxu0 0.0
    %324 = vmatmul.mubr.f32.gmra.mxu0 %v233
    %v325 = vpop.f32.mrf.mxu0
    %v326 = vadd.f32 %v257, %v325
    %v327 = vpop.f32.mrf.mxu0
    %328 = vdwg.mxu0
    %v329 = vmax.f32 %v326, 0.0
    %s330 = scalar_lea.vmem [#allocation4], 384
    %v331 = vld [vmem:[%s330] sm:$0xff]
    %v332 = vld [vmem:[%s330 + $0x8] sm:$0xff]
    %v333 = vld [vmem:[%s330 + $0x10] sm:$0xff]
    %v334 = vld [vmem:[%s330 + $0x18] sm:$0xff]
    %v335 = vld [vmem:[%s330 + $0x20] sm:$0xff]
    %v336 = vld [vmem:[%s330 + $0x28] sm:$0xff]
    %v337 = vld [vmem:[%s330 + $0x30] sm:$0xff]
    %v338 = vld [vmem:[%s330 + $0x38] sm:$0xff]
    %v339 = vld [vmem:[%s330 + $0x40] sm:$0xff]
    %v340 = vld [vmem:[%s330 + $0x48] sm:$0xff]
    %v341 = vld [vmem:[%s330 + $0x50] sm:$0xff]
    %v342 = vld [vmem:[%s330 + $0x58] sm:$0xff]
    %v343 = vld [vmem:[%s330 + $0x60] sm:$0xff]
    %v344 = vld [vmem:[%s330 + $0x68] sm:$0xff]
    %v345 = vld [vmem:[%s330 + $0x70] sm:$0xff]
    %v346 = vld [vmem:[%s330 + $0x78] sm:$0xff]
    %s347 = scalar_lea.vmem [#allocation6], 3
    %v348 = vld [vmem:[%s347] sm:$0x1]
    %v350 = vlaneseq
    %v351 = vshrl.u32 %v350, 7
    %v352 = vsub.s32 0, %v351
    %v353 = vrot.slane %v348, %v352
    %355 = vmatprep.subr.mxu0 0.0
    %356 = vmatpush1.msra.mxu0 %v346
    %357 = vmatprep.subr.mxu0 0.0
    %358 = vmatpush1.msra.mxu0 %v345
    %359 = vmatprep.subr.mxu0 0.0
    %360 = vmatpush1.msra.mxu0 %v344
    %361 = vmatprep.subr.mxu0 0.0
    %362 = vmatpush1.msra.mxu0 %v343
    %363 = vmatprep.subr.mxu0 0.0
    %364 = vmatpush1.msra.mxu0 %v342
    %365 = vmatprep.subr.mxu0 0.0
    %366 = vmatpush1.msra.mxu0 %v341
    %367 = vmatprep.subr.mxu0 0.0
    %368 = vmatpush1.msra.mxu0 %v340
    %369 = vmatprep.subr.mxu0 0.0
    %370 = vmatpush1.msra.mxu0 %v339
    %371 = vmatprep.subr.mxu0 0.0
    %372 = vmatpush1.msra.mxu0 %v338
    %373 = vmatprep.subr.mxu0 0.0
    %374 = vmatpush1.msra.mxu0 %v337
    %375 = vmatprep.subr.mxu0 0.0
    %376 = vmatpush1.msra.mxu0 %v336
    %377 = vmatprep.subr.mxu0 0.0
    %378 = vmatpush1.msra.mxu0 %v335
    %379 = vmatprep.subr.mxu0 0.0
    %380 = vmatpush1.msra.mxu0 %v334
    %381 = vmatprep.subr.mxu0 0.0
    %382 = vmatpush1.msra.mxu0 %v333
    %383 = vmatprep.subr.mxu0 0.0
    %384 = vmatpush1.msra.mxu0 %v332
    %385 = vmatprep.subr.mxu0 0.0
    %386 = vmatpush1.msra.mxu0 %v331
    %387 = vmatprep.subr.mxu0 0.0
    %388 = vmatpush2.msra.mxu0 0.0
    %389 = vmatprep.subr.mxu0 0.0
    %390 = vmatpush2.msra.mxu0 0.0
    %391 = vmatprep.subr.mxu0 0.0
    %392 = vmatpush2.msra.mxu0 0.0
    %393 = vmatprep.subr.mxu0 0.0
    %394 = vmatpush2.msra.mxu0 0.0
    %395 = vmatprep.subr.mxu0 0.0
    %396 = vmatpush2.msra.mxu0 0.0
    %397 = vmatprep.subr.mxu0 0.0
    %398 = vmatpush2.msra.mxu0 0.0
    %399 = vmatprep.subr.mxu0 0.0
    %400 = vmatpush2.msra.mxu0 0.0
    %401 = vmatprep.subr.mxu0 0.0
    %402 = vmatpush2.msra.mxu0 0.0
    %403 = vmatprep.subr.mxu0 0.0
    %404 = vmatpush2.msra.mxu0 0.0
    %405 = vmatprep.subr.mxu0 0.0
    %406 = vmatpush2.msra.mxu0 0.0
    %407 = vmatprep.subr.mxu0 0.0
    %408 = vmatpush2.msra.mxu0 0.0
    %409 = vmatprep.subr.mxu0 0.0
    %410 = vmatpush2.msra.mxu0 0.0
    %411 = vmatprep.subr.mxu0 0.0
    %412 = vmatpush2.msra.mxu0 0.0
    %413 = vmatprep.subr.mxu0 0.0
    %414 = vmatpush2.msra.mxu0 0.0
    %415 = vmatprep.subr.mxu0 0.0
    %416 = vmatpush2.msra.mxu0 0.0
    %417 = vmatprep.subr.mxu0 0.0
    %418 = vmatpush2.msra.mxu0 0.0
    %419 = vmatprep.mubr.f32.mxu0 0.0
    %420 = vmatmul.mubr.f32.gmra.mxu0 %v329
    %v421 = vpop.f32.mrf.mxu0
    %v422 = vadd.f32 %v353, %v421
    %v423 = vpop.f32.mrf.mxu0
    %424 = vdwg.mxu0
    %v425 = vmax.f32 %v422, 0.0
    %s426 = scalar_lea.vmem [#allocation4], 512
    %v427 = vld [vmem:[%s426] sm:$0xff]
    %v428 = vld [vmem:[%s426 + $0x8] sm:$0xff]
    %v429 = vld [vmem:[%s426 + $0x10] sm:$0xff]
    %v430 = vld [vmem:[%s426 + $0x18] sm:$0xff]
    %v431 = vld [vmem:[%s426 + $0x20] sm:$0xff]
    %v432 = vld [vmem:[%s426 + $0x28] sm:$0xff]
    %v433 = vld [vmem:[%s426 + $0x30] sm:$0xff]
    %v434 = vld [vmem:[%s426 + $0x38] sm:$0xff]
    %v435 = vld [vmem:[%s426 + $0x40] sm:$0xff]
    %v436 = vld [vmem:[%s426 + $0x48] sm:$0xff]
    %v437 = vld [vmem:[%s426 + $0x50] sm:$0xff]
    %v438 = vld [vmem:[%s426 + $0x58] sm:$0xff]
    %v439 = vld [vmem:[%s426 + $0x60] sm:$0xff]
    %v440 = vld [vmem:[%s426 + $0x68] sm:$0xff]
    %v441 = vld [vmem:[%s426 + $0x70] sm:$0xff]
    %v442 = vld [vmem:[%s426 + $0x78] sm:$0xff]
    %s443 = scalar_lea.vmem [#allocation6], 4
    %v444 = vld [vmem:[%s443] sm:$0x1]
    %v446 = vlaneseq
    %v447 = vshrl.u32 %v446, 7
    %v448 = vsub.s32 0, %v447
    %v449 = vrot.slane %v444, %v448
    %451 = vmatprep.subr.mxu0 0.0
    %452 = vmatpush1.msra.mxu0 %v442
    %453 = vmatprep.subr.mxu0 0.0
    %454 = vmatpush1.msra.mxu0 %v441
    %455 = vmatprep.subr.mxu0 0.0
    %456 = vmatpush1.msra.mxu0 %v440
    %457 = vmatprep.subr.mxu0 0.0
    %458 = vmatpush1.msra.mxu0 %v439
    %459 = vmatprep.subr.mxu0 0.0
    %460 = vmatpush1.msra.mxu0 %v438
    %461 = vmatprep.subr.mxu0 0.0
    %462 = vmatpush1.msra.mxu0 %v437
    %463 = vmatprep.subr.mxu0 0.0
    %464 = vmatpush1.msra.mxu0 %v436
    %465 = vmatprep.subr.mxu0 0.0
    %466 = vmatpush1.msra.mxu0 %v435
    %467 = vmatprep.subr.mxu0 0.0
    %468 = vmatpush1.msra.mxu0 %v434
    %469 = vmatprep.subr.mxu0 0.0
    %470 = vmatpush1.msra.mxu0 %v433
    %471 = vmatprep.subr.mxu0 0.0
    %472 = vmatpush1.msra.mxu0 %v432
    %473 = vmatprep.subr.mxu0 0.0
    %474 = vmatpush1.msra.mxu0 %v431
    %475 = vmatprep.subr.mxu0 0.0
    %476 = vmatpush1.msra.mxu0 %v430
    %477 = vmatprep.subr.mxu0 0.0
    %478 = vmatpush1.msra.mxu0 %v429
    %479 = vmatprep.subr.mxu0 0.0
    %480 = vmatpush1.msra.mxu0 %v428
    %481 = vmatprep.subr.mxu0 0.0
    %482 = vmatpush1.msra.mxu0 %v427
    %483 = vmatprep.subr.mxu0 0.0
    %484 = vmatpush2.msra.mxu0 0.0
    %485 = vmatprep.subr.mxu0 0.0
    %486 = vmatpush2.msra.mxu0 0.0
    %487 = vmatprep.subr.mxu0 0.0
    %488 = vmatpush2.msra.mxu0 0.0
    %489 = vmatprep.subr.mxu0 0.0
    %490 = vmatpush2.msra.mxu0 0.0
    %491 = vmatprep.subr.mxu0 0.0
    %492 = vmatpush2.msra.mxu0 0.0
    %493 = vmatprep.subr.mxu0 0.0
    %494 = vmatpush2.msra.mxu0 0.0
    %495 = vmatprep.subr.mxu0 0.0
    %496 = vmatpush2.msra.mxu0 0.0
    %497 = vmatprep.subr.mxu0 0.0
    %498 = vmatpush2.msra.mxu0 0.0
    %499 = vmatprep.subr.mxu0 0.0
    %500 = vmatpush2.msra.mxu0 0.0
    %501 = vmatprep.subr.mxu0 0.0
    %502 = vmatpush2.msra.mxu0 0.0
    %503 = vmatprep.subr.mxu0 0.0
    %504 = vmatpush2.msra.mxu0 0.0
    %505 = vmatprep.subr.mxu0 0.0
    %506 = vmatpush2.msra.mxu0 0.0
    %507 = vmatprep.subr.mxu0 0.0
    %508 = vmatpush2.msra.mxu0 0.0
    %509 = vmatprep.subr.mxu0 0.0
    %510 = vmatpush2.msra.mxu0 0.0
    %511 = vmatprep.subr.mxu0 0.0
    %512 = vmatpush2.msra.mxu0 0.0
    %513 = vmatprep.subr.mxu0 0.0
    %514 = vmatpush2.msra.mxu0 0.0
    %515 = vmatprep.mubr.f32.mxu0 0.0
    %516 = vmatmul.mubr.f32.gmra.mxu0 %v425
    %v517 = vpop.f32.mrf.mxu0
    %v518 = vadd.f32 %v449, %v517
    %v519 = vpop.f32.mrf.mxu0
    %520 = vdwg.mxu0
    %v521 = vmax.f32 %v518, 0.0
    %s522 = scalar_lea.vmem [#allocation4], 640
    %v523 = vld [vmem:[%s522] sm:$0xff]
    %v524 = vld [vmem:[%s522 + $0x8] sm:$0xff]
    %v525 = vld [vmem:[%s522 + $0x10] sm:$0xff]
    %v526 = vld [vmem:[%s522 + $0x18] sm:$0xff]
    %v527 = vld [vmem:[%s522 + $0x20] sm:$0xff]
    %v528 = vld [vmem:[%s522 + $0x28] sm:$0xff]
    %v529 = vld [vmem:[%s522 + $0x30] sm:$0xff]
    %v530 = vld [vmem:[%s522 + $0x38] sm:$0xff]
    %v531 = vld [vmem:[%s522 + $0x40] sm:$0xff]
    %v532 = vld [vmem:[%s522 + $0x48] sm:$0xff]
    %v533 = vld [vmem:[%s522 + $0x50] sm:$0xff]
    %v534 = vld [vmem:[%s522 + $0x58] sm:$0xff]
    %v535 = vld [vmem:[%s522 + $0x60] sm:$0xff]
    %v536 = vld [vmem:[%s522 + $0x68] sm:$0xff]
    %v537 = vld [vmem:[%s522 + $0x70] sm:$0xff]
    %v538 = vld [vmem:[%s522 + $0x78] sm:$0xff]
    %s539 = scalar_lea.vmem [#allocation6], 5
    %v540 = vld [vmem:[%s539] sm:$0x1]
    %v542 = vlaneseq
    %v543 = vshrl.u32 %v542, 7
    %v544 = vsub.s32 0, %v543
    %v545 = vrot.slane %v540, %v544
    %547 = vmatprep.subr.mxu0 0.0
    %548 = vmatpush1.msra.mxu0 %v538
    %549 = vmatprep.subr.mxu0 0.0
    %550 = vmatpush1.msra.mxu0 %v537
    %551 = vmatprep.subr.mxu0 0.0
    %552 = vmatpush1.msra.mxu0 %v536
    %553 = vmatprep.subr.mxu0 0.0
    %554 = vmatpush1.msra.mxu0 %v535
    %555 = vmatprep.subr.mxu0 0.0
    %556 = vmatpush1.msra.mxu0 %v534
    %557 = vmatprep.subr.mxu0 0.0
    %558 = vmatpush1.msra.mxu0 %v533
    %559 = vmatprep.subr.mxu0 0.0
    %560 = vmatpush1.msra.mxu0 %v532
    %561 = vmatprep.subr.mxu0 0.0
    %562 = vmatpush1.msra.mxu0 %v531
    %563 = vmatprep.subr.mxu0 0.0
    %564 = vmatpush1.msra.mxu0 %v530
    %565 = vmatprep.subr.mxu0 0.0
    %566 = vmatpush1.msra.mxu0 %v529
    %567 = vmatprep.subr.mxu0 0.0
    %568 = vmatpush1.msra.mxu0 %v528
    %569 = vmatprep.subr.mxu0 0.0
    %570 = vmatpush1.msra.mxu0 %v527
    %571 = vmatprep.subr.mxu0 0.0
    %572 = vmatpush1.msra.mxu0 %v526
    %573 = vmatprep.subr.mxu0 0.0
    %574 = vmatpush1.msra.mxu0 %v525
    %575 = vmatprep.subr.mxu0 0.0
    %576 = vmatpush1.msra.mxu0 %v524
    %577 = vmatprep.subr.mxu0 0.0
    %578 = vmatpush1.msra.mxu0 %v523
    %579 = vmatprep.subr.mxu0 0.0
    %580 = vmatpush2.msra.mxu0 0.0
    %581 = vmatprep.subr.mxu0 0.0
    %582 = vmatpush2.msra.mxu0 0.0
    %583 = vmatprep.subr.mxu0 0.0
    %584 = vmatpush2.msra.mxu0 0.0
    %585 = vmatprep.subr.mxu0 0.0
    %586 = vmatpush2.msra.mxu0 0.0
    %587 = vmatprep.subr.mxu0 0.0
    %588 = vmatpush2.msra.mxu0 0.0
    %589 = vmatprep.subr.mxu0 0.0
    %590 = vmatpush2.msra.mxu0 0.0
    %591 = vmatprep.subr.mxu0 0.0
    %592 = vmatpush2.msra.mxu0 0.0
    %593 = vmatprep.subr.mxu0 0.0
    %594 = vmatpush2.msra.mxu0 0.0
    %595 = vmatprep.subr.mxu0 0.0
    %596 = vmatpush2.msra.mxu0 0.0
    %597 = vmatprep.subr.mxu0 0.0
    %598 = vmatpush2.msra.mxu0 0.0
    %599 = vmatprep.subr.mxu0 0.0
    %600 = vmatpush2.msra.mxu0 0.0
    %601 = vmatprep.subr.mxu0 0.0
    %602 = vmatpush2.msra.mxu0 0.0
    %603 = vmatprep.subr.mxu0 0.0
    %604 = vmatpush2.msra.mxu0 0.0
    %605 = vmatprep.subr.mxu0 0.0
    %606 = vmatpush2.msra.mxu0 0.0
    %607 = vmatprep.subr.mxu0 0.0
    %608 = vmatpush2.msra.mxu0 0.0
    %609 = vmatprep.subr.mxu0 0.0
    %610 = vmatpush2.msra.mxu0 0.0
    %611 = vmatprep.mubr.f32.mxu0 0.0
    %612 = vmatmul.mubr.f32.gmra.mxu0 %v521
    %v613 = vpop.f32.mrf.mxu0
    %v614 = vadd.f32 %v545, %v613
    %v615 = vpop.f32.mrf.mxu0
    %616 = vdwg.mxu0
    %v617 = vmax.f32 %v614, 0.0
    %s618 = scalar_lea.vmem [#allocation4], 768
    %v619 = vld [vmem:[%s618] sm:$0xff]
    %v620 = vld [vmem:[%s618 + $0x8] sm:$0xff]
    %v621 = vld [vmem:[%s618 + $0x10] sm:$0xff]
    %v622 = vld [vmem:[%s618 + $0x18] sm:$0xff]
    %v623 = vld [vmem:[%s618 + $0x20] sm:$0xff]
    %v624 = vld [vmem:[%s618 + $0x28] sm:$0xff]
    %v625 = vld [vmem:[%s618 + $0x30] sm:$0xff]
    %v626 = vld [vmem:[%s618 + $0x38] sm:$0xff]
    %v627 = vld [vmem:[%s618 + $0x40] sm:$0xff]
    %v628 = vld [vmem:[%s618 + $0x48] sm:$0xff]
    %v629 = vld [vmem:[%s618 + $0x50] sm:$0xff]
    %v630 = vld [vmem:[%s618 + $0x58] sm:$0xff]
    %v631 = vld [vmem:[%s618 + $0x60] sm:$0xff]
    %v632 = vld [vmem:[%s618 + $0x68] sm:$0xff]
    %v633 = vld [vmem:[%s618 + $0x70] sm:$0xff]
    %v634 = vld [vmem:[%s618 + $0x78] sm:$0xff]
    %s635 = scalar_lea.vmem [#allocation6], 6
    %v636 = vld [vmem:[%s635] sm:$0x1]
    %v638 = vlaneseq
    %v639 = vshrl.u32 %v638, 7
    %v640 = vsub.s32 0, %v639
    %v641 = vrot.slane %v636, %v640
    %643 = vmatprep.subr.mxu0 0.0
    %644 = vmatpush1.msra.mxu0 %v634
    %645 = vmatprep.subr.mxu0 0.0
    %646 = vmatpush1.msra.mxu0 %v633
    %647 = vmatprep.subr.mxu0 0.0
    %648 = vmatpush1.msra.mxu0 %v632
    %649 = vmatprep.subr.mxu0 0.0
    %650 = vmatpush1.msra.mxu0 %v631
    %651 = vmatprep.subr.mxu0 0.0
    %652 = vmatpush1.msra.mxu0 %v630
    %653 = vmatprep.subr.mxu0 0.0
    %654 = vmatpush1.msra.mxu0 %v629
    %655 = vmatprep.subr.mxu0 0.0
    %656 = vmatpush1.msra.mxu0 %v628
    %657 = vmatprep.subr.mxu0 0.0
    %658 = vmatpush1.msra.mxu0 %v627
    %659 = vmatprep.subr.mxu0 0.0
    %660 = vmatpush1.msra.mxu0 %v626
    %661 = vmatprep.subr.mxu0 0.0
    %662 = vmatpush1.msra.mxu0 %v625
    %663 = vmatprep.subr.mxu0 0.0
    %664 = vmatpush1.msra.mxu0 %v624
    %665 = vmatprep.subr.mxu0 0.0
    %666 = vmatpush1.msra.mxu0 %v623
    %667 = vmatprep.subr.mxu0 0.0
    %668 = vmatpush1.msra.mxu0 %v622
    %669 = vmatprep.subr.mxu0 0.0
    %670 = vmatpush1.msra.mxu0 %v621
    %671 = vmatprep.subr.mxu0 0.0
    %672 = vmatpush1.msra.mxu0 %v620
    %673 = vmatprep.subr.mxu0 0.0
    %674 = vmatpush1.msra.mxu0 %v619
    %675 = vmatprep.subr.mxu0 0.0
    %676 = vmatpush2.msra.mxu0 0.0
    %677 = vmatprep.subr.mxu0 0.0
    %678 = vmatpush2.msra.mxu0 0.0
    %679 = vmatprep.subr.mxu0 0.0
    %680 = vmatpush2.msra.mxu0 0.0
    %681 = vmatprep.subr.mxu0 0.0
    %682 = vmatpush2.msra.mxu0 0.0
    %683 = vmatprep.subr.mxu0 0.0
    %684 = vmatpush2.msra.mxu0 0.0
    %685 = vmatprep.subr.mxu0 0.0
    %686 = vmatpush2.msra.mxu0 0.0
    %687 = vmatprep.subr.mxu0 0.0
    %688 = vmatpush2.msra.mxu0 0.0
    %689 = vmatprep.subr.mxu0 0.0
    %690 = vmatpush2.msra.mxu0 0.0
    %691 = vmatprep.subr.mxu0 0.0
    %692 = vmatpush2.msra.mxu0 0.0
    %693 = vmatprep.subr.mxu0 0.0
    %694 = vmatpush2.msra.mxu0 0.0
    %695 = vmatprep.subr.mxu0 0.0
    %696 = vmatpush2.msra.mxu0 0.0
    %697 = vmatprep.subr.mxu0 0.0
    %698 = vmatpush2.msra.mxu0 0.0
    %699 = vmatprep.subr.mxu0 0.0
    %700 = vmatpush2.msra.mxu0 0.0
    %701 = vmatprep.subr.mxu0 0.0
    %702 = vmatpush2.msra.mxu0 0.0
    %703 = vmatprep.subr.mxu0 0.0
    %704 = vmatpush2.msra.mxu0 0.0
    %705 = vmatprep.subr.mxu0 0.0
    %706 = vmatpush2.msra.mxu0 0.0
    %707 = vmatprep.mubr.f32.mxu0 0.0
    %708 = vmatmul.mubr.f32.gmra.mxu0 %v617
    %v709 = vpop.f32.mrf.mxu0
    %v710 = vadd.f32 %v641, %v709
    %v711 = vpop.f32.mrf.mxu0
    %712 = vdwg.mxu0
    %v713 = vmax.f32 %v710, 0.0
    %s714 = scalar_lea.vmem [#allocation4], 896
    %v715 = vld [vmem:[%s714] sm:$0xff]
    %v716 = vld [vmem:[%s714 + $0x8] sm:$0xff]
    %v717 = vld [vmem:[%s714 + $0x10] sm:$0xff]
    %v718 = vld [vmem:[%s714 + $0x18] sm:$0xff]
    %v719 = vld [vmem:[%s714 + $0x20] sm:$0xff]
    %v720 = vld [vmem:[%s714 + $0x28] sm:$0xff]
    %v721 = vld [vmem:[%s714 + $0x30] sm:$0xff]
    %v722 = vld [vmem:[%s714 + $0x38] sm:$0xff]
    %v723 = vld [vmem:[%s714 + $0x40] sm:$0xff]
    %v724 = vld [vmem:[%s714 + $0x48] sm:$0xff]
    %v725 = vld [vmem:[%s714 + $0x50] sm:$0xff]
    %v726 = vld [vmem:[%s714 + $0x58] sm:$0xff]
    %v727 = vld [vmem:[%s714 + $0x60] sm:$0xff]
    %v728 = vld [vmem:[%s714 + $0x68] sm:$0xff]
    %v729 = vld [vmem:[%s714 + $0x70] sm:$0xff]
    %v730 = vld [vmem:[%s714 + $0x78] sm:$0xff]
    %s731 = scalar_lea.vmem [#allocation6], 7
    %v732 = vld [vmem:[%s731] sm:$0x1]
    %v734 = vlaneseq
    %v735 = vshrl.u32 %v734, 7
    %v736 = vsub.s32 0, %v735
    %v737 = vrot.slane %v732, %v736
    %739 = vmatprep.subr.mxu0 0.0
    %740 = vmatpush1.msra.mxu0 %v730
    %741 = vmatprep.subr.mxu0 0.0
    %742 = vmatpush1.msra.mxu0 %v729
    %743 = vmatprep.subr.mxu0 0.0
    %744 = vmatpush1.msra.mxu0 %v728
    %745 = vmatprep.subr.mxu0 0.0
    %746 = vmatpush1.msra.mxu0 %v727
    %747 = vmatprep.subr.mxu0 0.0
    %748 = vmatpush1.msra.mxu0 %v726
    %749 = vmatprep.subr.mxu0 0.0
    %750 = vmatpush1.msra.mxu0 %v725
    %751 = vmatprep.subr.mxu0 0.0
    %752 = vmatpush1.msra.mxu0 %v724
    %753 = vmatprep.subr.mxu0 0.0
    %754 = vmatpush1.msra.mxu0 %v723
    %755 = vmatprep.subr.mxu0 0.0
    %756 = vmatpush1.msra.mxu0 %v722
    %757 = vmatprep.subr.mxu0 0.0
    %758 = vmatpush1.msra.mxu0 %v721
    %759 = vmatprep.subr.mxu0 0.0
    %760 = vmatpush1.msra.mxu0 %v720
    %761 = vmatprep.subr.mxu0 0.0
    %762 = vmatpush1.msra.mxu0 %v719
    %763 = vmatprep.subr.mxu0 0.0
    %764 = vmatpush1.msra.mxu0 %v718
    %765 = vmatprep.subr.mxu0 0.0
    %766 = vmatpush1.msra.mxu0 %v717
    %767 = vmatprep.subr.mxu0 0.0
    %768 = vmatpush1.msra.mxu0 %v716
    %769 = vmatprep.subr.mxu0 0.0
    %770 = vmatpush1.msra.mxu0 %v715
    %771 = vmatprep.subr.mxu0 0.0
    %772 = vmatpush2.msra.mxu0 0.0
    %773 = vmatprep.subr.mxu0 0.0
    %774 = vmatpush2.msra.mxu0 0.0
    %775 = vmatprep.subr.mxu0 0.0
    %776 = vmatpush2.msra.mxu0 0.0
    %777 = vmatprep.subr.mxu0 0.0
    %778 = vmatpush2.msra.mxu0 0.0
    %779 = vmatprep.subr.mxu0 0.0
    %780 = vmatpush2.msra.mxu0 0.0
    %781 = vmatprep.subr.mxu0 0.0
    %782 = vmatpush2.msra.mxu0 0.0
    %783 = vmatprep.subr.mxu0 0.0
    %784 = vmatpush2.msra.mxu0 0.0
    %785 = vmatprep.subr.mxu0 0.0
    %786 = vmatpush2.msra.mxu0 0.0
    %787 = vmatprep.subr.mxu0 0.0
    %788 = vmatpush2.msra.mxu0 0.0
    %789 = vmatprep.subr.mxu0 0.0
    %790 = vmatpush2.msra.mxu0 0.0
    %791 = vmatprep.subr.mxu0 0.0
    %792 = vmatpush2.msra.mxu0 0.0
    %793 = vmatprep.subr.mxu0 0.0
    %794 = vmatpush2.msra.mxu0 0.0
    %795 = vmatprep.subr.mxu0 0.0
    %796 = vmatpush2.msra.mxu0 0.0
    %797 = vmatprep.subr.mxu0 0.0
    %798 = vmatpush2.msra.mxu0 0.0
    %799 = vmatprep.subr.mxu0 0.0
    %800 = vmatpush2.msra.mxu0 0.0
    %801 = vmatprep.subr.mxu0 0.0
    %802 = vmatpush2.msra.mxu0 0.0
    %803 = vmatprep.mubr.f32.mxu0 0.0
    %804 = vmatmul.mubr.f32.gmra.mxu0 %v713
    %v805 = vpop.f32.mrf.mxu0
    %v806 = vadd.f32 %v737, %v805
    %v807 = vpop.f32.mrf.mxu0
    %808 = vdwg.mxu0
    %v809 = vmax.f32 %v806, 0.0
    %vm810 = vcmask 7168
    %811 = vst.msk [vmem:[%s3] sm:$0xff] %vm810, %v809
    // Predicated region
    $region26: #{tpu_custom_call.1} parent=1 // pred_check
      _
    $region27: #{tpu_custom_call.1} parent=1 // pred_check_branch
      %813 = sbr.rel (0) target = $region29
    $region28: #{tpu_custom_call.1} parent=1 // pred_region
      _
    $region29: #{tpu_custom_call.1} parent=1 // pred_fallthru
      _
    // Predicated region
    $region30: #{tpu_custom_call.1} parent=1 // pred_check
      _
    $region31: #{tpu_custom_call.1} parent=1 // pred_check_branch
      %815 = sbr.rel (0) target = $region33
    $region32: #{tpu_custom_call.1} parent=1 // pred_region
      _
    $region33: #{tpu_custom_call.1} parent=1 // pred_fallthru
      _
    %816 = vsyncpa [#allocation3], 1
    %817 = vsyncpa [#allocation5], 1

</llo_original>
